<compile_context>
chip_gen: v5e
topology: v5e:2x2
jax: 0.10.0
libtpu: 0.0.40
codegen_flags: <defaults>
</compile_context>

<pallas_src>
import jax
import jax.numpy as jnp
from jax.experimental import pallas as pl
from jax.experimental.pallas import tpu as pltpu

# ---- hyper-parameters (baked in, matching nn.Module defaults) ----------------
ACTION_RANGE = 1.0
LOG_STD_MIN = -20.0
LOG_STD_MAX = 2.0

# ---- problem sizes (small, consistent with the module) -----------------------
BATCH = 8
NUM_INPUTS = 16
NUM_ACTIONS = 8
HIDDEN_DIM = 32


def policy_kernel(state_ref,
                  w1_ref, b1_ref,
                  w2_ref, b2_ref,
                  wh_ref, bh_ref,
                  out_ref):
    """One batch tile of the MLP. Head matmuls are fused; output is packed
    as [mean | std] along the lane axis (single lane-dense store)."""
    x = state_ref[...]                                                   # (Tb, In)

    # linear1 + relu
    h1 = jnp.dot(x, w1_ref[...], preferred_element_type=jnp.float32) + b1_ref[...]
    h1 = jnp.maximum(h1, 0.0)                                            # (Tb, H)

    # linear2 + relu
    h2 = jnp.dot(h1, w2_ref[...], preferred_element_type=jnp.float32) + b2_ref[...]
    h2 = jnp.maximum(h2, 0.0)                                            # (Tb, H)

    # fused heads: columns [0, A) = mean logits, [A, 2A) = log_std logits
    h = jnp.dot(h2, wh_ref[...], preferred_element_type=jnp.float32) + bh_ref[...]

    a = out_ref.shape[-1] // 2
    col = jax.lax.broadcasted_iota(jnp.int32, h.shape, dimension=1)
    mean_part = ACTION_RANGE * jnp.tanh(h)
    std_part = jnp.exp(jnp.clip(h, LOG_STD_MIN, LOG_STD_MAX))
    # lane-wise select (no cross-lane movement), single full-tile store
    out_ref[...] = jnp.where(col >= a, std_part, mean_part)              # (Tb, 2A)


def _round_up(x, m):
    return ((x + m - 1) // m) * m


def policy_forward(state, params):
    """Wrapper: batch-gridded pallas_call; weights resident, activations tiled."""
    (w1, b1, w2, b2, wm, bm, ws, bs) = params
    B, n_in = state.shape
    A = wm.shape[1]

    # Fuse the two heads into one (H, 2A) weight / (1, 2A) bias.
    wh = jnp.concatenate([wm, ws], axis=1)
    bh = jnp.concatenate([bm, bs], axis=1)

    # Batch tiling: multiple of 8 sublanes; cap tile so large RL batches stream.
    tile_b = 256 if B >= 256 else _round_up(B, 8)
    b_padded = _round_up(B, tile_b)
    if b_padded != B:
        state = jnp.pad(state, ((0, b_padded - B), (0, 0)))

    grid = (b_padded // tile_b,)

    state_spec = pl.BlockSpec((tile_b, n_in), lambda i: (i, 0))
    out_spec = pl.BlockSpec((tile_b, 2 * A), lambda i: (i, 0))

    def resident(shape):
        # Full-array block, constant index_map: stays in VMEM across the grid.
        return pl.BlockSpec(shape, lambda i: (0, 0))

    packed = pl.pallas_call(
        policy_kernel,
        out_shape=jax.ShapeDtypeStruct((b_padded, 2 * A), jnp.float32),
        grid=grid,
        in_specs=[state_spec,
                  resident(w1.shape), resident(b1.shape),
                  resident(w2.shape), resident(b2.shape),
                  resident(wh.shape), resident(bh.shape)],
        out_specs=out_spec,
        compiler_params=pltpu.CompilerParams(
            dimension_semantics=("parallel",)),
    )(state, w1, b1, w2, b2, wh, bh)

    packed = packed[:B]
    return packed[:, :A], packed[:, A:]


def init_params(key, num_inputs, num_actions, hidden_dim):
    """Deterministic init mimicking nn.Linear default U(-1/sqrt(fan_in), 1/sqrt(fan_in)).

    Weights stored as (in_features, out_features); biases as (1, out_features).
    """
    def linear(key, fan_in, fan_out):
        kw, kb = jax.random.split(key)
        bound = 1.0 / (fan_in ** 0.5)
        w = jax.random.uniform(kw, (fan_in, fan_out), jnp.float32, -bound, bound)
        b = jax.random.uniform(kb, (1, fan_out), jnp.float32, -bound, bound)
        return w, b

    k1, k2, k3, k4 = jax.random.split(key, 4)
    w1, b1 = linear(k1, num_inputs, hidden_dim)
    w2, b2 = linear(k2, hidden_dim, hidden_dim)
    wm, bm = linear(k3, hidden_dim, num_actions)
    ws, bs = linear(k4, hidden_dim, num_actions)
    return (w1, b1, w2, b2, wm, bm, ws, bs)


def reference_forward(state, params):
    """Pure-JAX reference for correctness checking."""
    (w1, b1, w2, b2, wm, bm, ws, bs) = params
    h1 = jax.nn.relu(state @ w1 + b1)
    h2 = jax.nn.relu(h1 @ w2 + b2)
    mean = ACTION_RANGE * jnp.tanh(h2 @ wm + bm)
    log_std = jnp.clip(h2 @ ws + bs, LOG_STD_MIN, LOG_STD_MAX)
    return mean, jnp.exp(log_std)


if __name__ == "__main__":
    key = jax.random.PRNGKey(0)
    k_params, k_state = jax.random.split(key)

    params = init_params(k_params, NUM_INPUTS, NUM_ACTIONS, HIDDEN_DIM)
    state = jax.random.normal(k_state, (BATCH, NUM_INPUTS), jnp.float32)

    mean, std = policy_forward(state, params)
    jax.block_until_ready((mean, std))

    mean_ref, std_ref = reference_forward(state, params)
    assert mean.shape == (BATCH, NUM_ACTIONS) and std.shape == (BATCH, NUM_ACTIONS)
    assert jnp.allclose(mean, mean_ref, atol=1e-5, rtol=1e-5)
    assert jnp.allclose(std, std_ref, atol=1e-5, rtol=1e-5)

    print("KERNEL_OK")
</pallas_src>

<mosaic_0001>
module attributes {stable_mosaic.version = 11 : i64} {
  func.func @policy_kernel(%arg0: i32, %arg1: memref<8x16xf32, #tpu.memory_space<vmem>>, %arg2: memref<16x32xf32, #tpu.memory_space<vmem>>, %arg3: memref<1x32xf32, #tpu.memory_space<vmem>>, %arg4: memref<32x32xf32, #tpu.memory_space<vmem>>, %arg5: memref<1x32xf32, #tpu.memory_space<vmem>>, %arg6: memref<32x16xf32, #tpu.memory_space<vmem>>, %arg7: memref<1x16xf32, #tpu.memory_space<vmem>>, %arg8: memref<8x16xf32, #tpu.memory_space<vmem>>) attributes {dimension_semantics = [#tpu.dimension_semantics<parallel>], iteration_bounds = array<i64: 1>, scalar_prefetch = 0 : i64, scratch_operands = 0 : i64, tpu.core_type = #tpu.core_type<tc>, window_params = [{transform_indices = @transform_0, window_bounds = array<i64: 8, 16>}, {pipeline_mode = #tpu.pipeline_mode<synchronous>, transform_indices = @transform_1, window_bounds = array<i64: 16, 32>}, {pipeline_mode = #tpu.pipeline_mode<synchronous>, transform_indices = @transform_2, window_bounds = array<i64: 1, 32>}, {pipeline_mode = #tpu.pipeline_mode<synchronous>, transform_indices = @transform_3, window_bounds = array<i64: 32, 32>}, {pipeline_mode = #tpu.pipeline_mode<synchronous>, transform_indices = @transform_4, window_bounds = array<i64: 1, 32>}, {pipeline_mode = #tpu.pipeline_mode<synchronous>, transform_indices = @transform_5, window_bounds = array<i64: 32, 16>}, {pipeline_mode = #tpu.pipeline_mode<synchronous>, transform_indices = @transform_6, window_bounds = array<i64: 1, 16>}, {transform_indices = @transform_7, window_bounds = array<i64: 8, 16>}]} {
    %c0 = arith.constant 0 : index
    %c0_0 = arith.constant 0 : index
    %0 = vector.load %arg1[%c0, %c0_0] : memref<8x16xf32, #tpu.memory_space<vmem>>, vector<8x16xf32>
    %c0_1 = arith.constant 0 : index
    %c0_2 = arith.constant 0 : index
    %1 = vector.load %arg2[%c0_1, %c0_2] : memref<16x32xf32, #tpu.memory_space<vmem>>, vector<16x32xf32>
    %cst = arith.constant dense<0.000000e+00> : vector<8x32xf32>
    %2 = tpu.matmul %0, %1, %cst {dimension_numbers = #tpu.dot_dimension_numbers<[1], [0], [0], [1], [0, 0, 1, 1], [], []>} : vector<8x16xf32>, vector<16x32xf32>, vector<8x32xf32> -> vector<8x32xf32>
    %c0_3 = arith.constant 0 : index
    %c0_4 = arith.constant 0 : index
    %3 = vector.load %arg3[%c0_3, %c0_4] : memref<1x32xf32, #tpu.memory_space<vmem>>, vector<1x32xf32>
    %4 = vector.broadcast %3 : vector<1x32xf32> to vector<8x32xf32>
    %5 = arith.addf %2, %4 : vector<8x32xf32>
    %cst_5 = arith.constant 0.000000e+00 : f32
    %6 = vector.broadcast %cst_5 : f32 to vector<8x32xf32>
    %7 = arith.maximumf %5, %6 : vector<8x32xf32>
    %c0_6 = arith.constant 0 : index
    %c0_7 = arith.constant 0 : index
    %8 = vector.load %arg4[%c0_6, %c0_7] : memref<32x32xf32, #tpu.memory_space<vmem>>, vector<32x32xf32>
    %cst_8 = arith.constant dense<0.000000e+00> : vector<8x32xf32>
    %9 = tpu.matmul %7, %8, %cst_8 {dimension_numbers = #tpu.dot_dimension_numbers<[1], [0], [0], [1], [0, 0, 1, 1], [], []>} : vector<8x32xf32>, vector<32x32xf32>, vector<8x32xf32> -> vector<8x32xf32>
    %c0_9 = arith.constant 0 : index
    %c0_10 = arith.constant 0 : index
    %10 = vector.load %arg5[%c0_9, %c0_10] : memref<1x32xf32, #tpu.memory_space<vmem>>, vector<1x32xf32>
    %11 = vector.broadcast %10 : vector<1x32xf32> to vector<8x32xf32>
    %12 = arith.addf %9, %11 : vector<8x32xf32>
    %cst_11 = arith.constant 0.000000e+00 : f32
    %13 = vector.broadcast %cst_11 : f32 to vector<8x32xf32>
    %14 = arith.maximumf %12, %13 : vector<8x32xf32>
    %c0_12 = arith.constant 0 : index
    %c0_13 = arith.constant 0 : index
    %15 = vector.load %arg6[%c0_12, %c0_13] : memref<32x16xf32, #tpu.memory_space<vmem>>, vector<32x16xf32>
    %cst_14 = arith.constant dense<0.000000e+00> : vector<8x16xf32>
    %16 = tpu.matmul %14, %15, %cst_14 {dimension_numbers = #tpu.dot_dimension_numbers<[1], [0], [0], [1], [0, 0, 1, 1], [], []>} : vector<8x32xf32>, vector<32x16xf32>, vector<8x16xf32> -> vector<8x16xf32>
    %c0_15 = arith.constant 0 : index
    %c0_16 = arith.constant 0 : index
    %17 = vector.load %arg7[%c0_15, %c0_16] : memref<1x16xf32, #tpu.memory_space<vmem>>, vector<1x16xf32>
    %18 = vector.broadcast %17 : vector<1x16xf32> to vector<8x16xf32>
    %19 = arith.addf %16, %18 : vector<8x16xf32>
    %20 = tpu.iota {dimensions = array<i32: 1>} : vector<8x16xi32>
    %21 = math.tanh %19 : vector<8x16xf32>
    %cst_17 = arith.constant 1.000000e+00 : f32
    %22 = vector.broadcast %cst_17 : f32 to vector<8x16xf32>
    %23 = arith.mulf %22, %21 : vector<8x16xf32>
    %cst_18 = arith.constant -2.000000e+01 : f32
    %cst_19 = arith.constant 2.000000e+00 : f32
    %24 = vector.broadcast %cst_18 : f32 to vector<8x16xf32>
    %25 = arith.maximumf %24, %19 : vector<8x16xf32>
    %26 = vector.broadcast %cst_19 : f32 to vector<8x16xf32>
    %27 = arith.minimumf %26, %25 : vector<8x16xf32>
    %28 = math.exp %27 : vector<8x16xf32>
    %c8_i32 = arith.constant 8 : i32
    %29 = vector.broadcast %c8_i32 : i32 to vector<8x16xi32>
    %30 = arith.cmpi sge, %20, %29 : vector<8x16xi32>
    %31 = arith.select %30, %28, %23 : vector<8x16xi1>, vector<8x16xf32>
    %c0_20 = arith.constant 0 : index
    %c0_21 = arith.constant 0 : index
    %32 = vector.load %arg8[%c0_20, %c0_21] : memref<8x16xf32, #tpu.memory_space<vmem>>, vector<8x16xf32>
    tpu.vector_store %arg8[%c0_20, %c0_21], %31 {strides = array<i32>} : memref<8x16xf32, #tpu.memory_space<vmem>>, vector<8x16xf32>,
    return
  }
  func.func @transform_0(%arg0: i32) -> (i32, i32) {
    %c0_i32 = arith.constant 0 : i32
    %c0_i32_0 = arith.constant 0 : i32
    return %arg0, %c0_i32 : i32, i32
  }
  func.func @transform_1(%arg0: i32) -> (i32, i32) {
    %c0_i32 = arith.constant 0 : i32
    %c0_i32_0 = arith.constant 0 : i32
    %c0_i32_1 = arith.constant 0 : i32
    return %c0_i32, %c0_i32_0 : i32, i32
  }
  func.func @transform_2(%arg0: i32) -> (i32, i32) {
    %c0_i32 = arith.constant 0 : i32
    %c0_i32_0 = arith.constant 0 : i32
    %c0_i32_1 = arith.constant 0 : i32
    return %c0_i32, %c0_i32_0 : i32, i32
  }
  func.func @transform_3(%arg0: i32) -> (i32, i32) {
    %c0_i32 = arith.constant 0 : i32
    %c0_i32_0 = arith.constant 0 : i32
    %c0_i32_1 = arith.constant 0 : i32
    return %c0_i32, %c0_i32_0 : i32, i32
  }
  func.func @transform_4(%arg0: i32) -> (i32, i32) {
    %c0_i32 = arith.constant 0 : i32
    %c0_i32_0 = arith.constant 0 : i32
    %c0_i32_1 = arith.constant 0 : i32
    return %c0_i32, %c0_i32_0 : i32, i32
  }
  func.func @transform_5(%arg0: i32) -> (i32, i32) {
    %c0_i32 = arith.constant 0 : i32
    %c0_i32_0 = arith.constant 0 : i32
    %c0_i32_1 = arith.constant 0 : i32
    return %c0_i32, %c0_i32_0 : i32, i32
  }
  func.func @transform_6(%arg0: i32) -> (i32, i32) {
    %c0_i32 = arith.constant 0 : i32
    %c0_i32_0 = arith.constant 0 : i32
    %c0_i32_1 = arith.constant 0 : i32
    return %c0_i32, %c0_i32_0 : i32, i32
  }
  func.func @transform_7(%arg0: i32) -> (i32, i32) {
    %c0_i32 = arith.constant 0 : i32
    %c0_i32_0 = arith.constant 0 : i32
    return %arg0, %c0_i32 : i32, i32
  }
}

</mosaic_0001>

<llo_original>
// kernel: tpu_custom_call.1
$region0: #{tpu_custom_call.1}
  #allocation0 [shape = 'u32[]', space=smem, size = 0x4, offset = 0x4, fixed_abs, tag = 'smem constant byte address 0x4 - core index']
  #allocation1 [shape = 'u32[72,128]{1,0:T(1,128)}', space=vmem, size = 0x9000, scoped, tag = 'internal scratch']
  %s0 = inlined_call_operand.hbm [shape: f32[8,16], index: 0, kind: input, shape index: {}]
  %s1 = inlined_call_operand.vmem [shape: f32[16,32], index: 1, kind: input, shape index: {}]
  %s2 = inlined_call_operand.vmem [shape: f32[1,32], index: 2, kind: input, shape index: {}]
  %s3 = inlined_call_operand.vmem [shape: f32[32,32], index: 3, kind: input, shape index: {}]
  %s4 = inlined_call_operand.vmem [shape: f32[1,32], index: 4, kind: input, shape index: {}]
  %s5 = inlined_call_operand.vmem [shape: f32[32,16], index: 5, kind: input, shape index: {}]
  %s6 = inlined_call_operand.vmem [shape: f32[1,16], index: 6, kind: input, shape index: {}]
  %s7 = inlined_call_operand.hbm [shape: f32[8,16], index: 7, kind: output, shape index: {}]
  %s8 = sld [smem:[#allocation0]]
  $region42: #{tpu_custom_call.1} parent=0
    _
  %s10 = ssub.s32 1, %s8
  %s11 = scalar_select 0, %s10, %s8
  $region1: #{tpu_custom_call.1} parent=0
    #allocation2 [shape = 'u8[4096]{0}', space=vmem, size = 0x1000, scoped, tag = 'input window, operand 0, single buffered']
    #allocation3 [shape = 's32[1]{0}', space=sflag, size = 0x4, scoped, tag = 'scoped memory for tpu_custom_call.1']
    #allocation4 [shape = 's32[1]{0}', space=sflag, size = 0x4, scoped, tag = 'scoped memory for tpu_custom_call.1']
    #allocation5 [shape = 'u8[4096]{0}', space=vmem, size = 0x1000, scoped, tag = 'output window, operand 0, single buffered']
    %12 = vsyncpa [#allocation3], 0
    %13 = vsyncpa [#allocation4], 0
    // Predicated region
    $region2: #{tpu_custom_call.1} parent=1 // pred_check
      _
    $region3: #{tpu_custom_call.1} parent=1 // pred_check_branch
      %15 = sbr.rel (0) target = $region5
    $region4: #{tpu_custom_call.1} parent=1 // pred_region
      %17 = vsyncadd [#allocation3], 0
      %s19 = sshll.u32 %s0, 4
      %s20 = int_to_ptr.hbm [resolvable:$true] %s19
      %s21 = sshll.u32 [#allocation2], 4
      %s22 = int_to_ptr.vmem [resolvable:$true] %s21
      %24 = dma.hbm_to_vmem [thread:$0]  %s20, 128, %s22, [#allocation3]
    $region5: #{tpu_custom_call.1} parent=1 // pred_fallthru
      _
    // Predicated region
    $region6: #{tpu_custom_call.1} parent=1 // pred_check
      _
    $region7: #{tpu_custom_call.1} parent=1 // pred_check_branch
      %26 = sbr.rel (0) target = $region9
    $region8: #{tpu_custom_call.1} parent=1 // pred_region
      _
    $region9: #{tpu_custom_call.1} parent=1 // pred_fallthru
      _
    // Predicated region
    $region10: #{tpu_custom_call.1} parent=1 // pred_check
      _
    $region11: #{tpu_custom_call.1} parent=1 // pred_check_branch
      %28 = sbr.rel (0) target = $region13
    $region12: #{tpu_custom_call.1} parent=1 // pred_region
      _
    $region13: #{tpu_custom_call.1} parent=1 // pred_fallthru
      _
    // Predicated region
    $region14: #{tpu_custom_call.1} parent=1 // pred_check
      _
    $region15: #{tpu_custom_call.1} parent=1 // pred_check_branch
      %30 = sbr.rel (0) target = $region17
    $region16: #{tpu_custom_call.1} parent=1 // pred_region
      _
    $region17: #{tpu_custom_call.1} parent=1 // pred_fallthru
      _
    // Predicated region
    $region18: #{tpu_custom_call.1} parent=1 // pred_check
      _
    $region19: #{tpu_custom_call.1} parent=1 // pred_check_branch
      %32 = sbr.rel (0) target = $region21
    $region20: #{tpu_custom_call.1} parent=1 // pred_region
      _
    $region21: #{tpu_custom_call.1} parent=1 // pred_fallthru
      _
    // Predicated region
    $region22: #{tpu_custom_call.1} parent=1 // pred_check
      _
    $region23: #{tpu_custom_call.1} parent=1 // pred_check_branch
      %34 = sbr.rel (0) target = $region25
    $region24: #{tpu_custom_call.1} parent=1 // pred_region
      _
    $region25: #{tpu_custom_call.1} parent=1 // pred_fallthru
      _
    // Predicated region
    $region26: #{tpu_custom_call.1} parent=1 // pred_check
      _
    $region27: #{tpu_custom_call.1} parent=1 // pred_check_branch
      %36 = sbr.rel (0) target = $region29
    $region28: #{tpu_custom_call.1} parent=1 // pred_region
      _
    $region29: #{tpu_custom_call.1} parent=1 // pred_fallthru
      _
    // Predicated region
    $region30: #{tpu_custom_call.1} parent=1 // pred_check
      _
    $region31: #{tpu_custom_call.1} parent=1 // pred_check_branch
      %38 = sbr.rel (0) target = $region33
    $region32: #{tpu_custom_call.1} parent=1 // pred_region
      %40 = dma.done [#allocation3], 128
    $region33: #{tpu_custom_call.1} parent=1 // pred_fallthru
      _
    %v41 = vld [vmem:[#allocation2] sm:$0xff]
    %v42 = vld [vmem:[%s1] sm:$0xff]
    %v43 = vld [vmem:[%s1 + $0x8] sm:$0xff]
    %v44 = vld [vmem:[%s2] sm:$0x1]
    %v46 = vperm.slane %v44, 0
    %vm48 = vcmask 130048
    %v50 = vsel %vm48, %v41, 0
    %52 = vmatpush.msra.mxu0 0.0
    %53 = vmatpush.msra.mxu0 0.0
    %54 = vmatpush.msra.mxu0 0.0
    %55 = vmatpush.msra.mxu0 0.0
    %56 = vmatpush.msra.mxu0 0.0
    %57 = vmatpush.msra.mxu0 0.0
    %58 = vmatpush.msra.mxu0 0.0
    %59 = vmatpush.msra.mxu0 0.0
    %60 = vmatpush.msra.mxu0 0.0
    %61 = vmatpush.msra.mxu0 0.0
    %62 = vmatpush.msra.mxu0 0.0
    %63 = vmatpush.msra.mxu0 0.0
    %64 = vmatpush.msra.mxu0 0.0
    %65 = vmatpush.msra.mxu0 0.0
    %66 = vmatpush.msra.mxu0 %v43
    %67 = vmatpush.msra.mxu0 %v42
    %68 = vmatmul.f32.gmra.mxu0 %v50
    %v69 = vpop.f32.mrf.mxu0
    %v70 = vadd.f32 %v46, %v69
    %71 = vdwg.mxu0
    %v72 = vmax.f32 %v70, 0.0
    %v73 = vld [vmem:[%s3] sm:$0xff]
    %v74 = vld [vmem:[%s3 + $0x8] sm:$0xff]
    %v75 = vld [vmem:[%s3 + $0x10] sm:$0xff]
    %v76 = vld [vmem:[%s3 + $0x18] sm:$0xff]
    %v77 = vld [vmem:[%s4] sm:$0x1]
    %v79 = vperm.slane %v77, 0
    %vm81 = vcmask 261120
    %v83 = vsel %vm81, %v72, 0
    %85 = vmatpush.msra.mxu0 0.0
    %86 = vmatpush.msra.mxu0 0.0
    %87 = vmatpush.msra.mxu0 0.0
    %88 = vmatpush.msra.mxu0 0.0
    %89 = vmatpush.msra.mxu0 0.0
    %90 = vmatpush.msra.mxu0 0.0
    %91 = vmatpush.msra.mxu0 0.0
    %92 = vmatpush.msra.mxu0 0.0
    %93 = vmatpush.msra.mxu0 0.0
    %94 = vmatpush.msra.mxu0 0.0
    %95 = vmatpush.msra.mxu0 0.0
    %96 = vmatpush.msra.mxu0 0.0
    %97 = vmatpush.msra.mxu0 %v76
    %98 = vmatpush.msra.mxu0 %v75
    %99 = vmatpush.msra.mxu0 %v74
    %100 = vmatpush.msra.mxu0 %v73
    %101 = vmatmul.f32.gmra.mxu0 %v83
    %v102 = vpop.f32.mrf.mxu0
    %v103 = vadd.f32 %v79, %v102
    %104 = vdwg.mxu0
    %v105 = vmax.f32 %v103, 0.0
    %v106 = vld [vmem:[%s5] sm:$0xff]
    %v107 = vld [vmem:[%s5 + $0x8] sm:$0xff]
    %v108 = vld [vmem:[%s5 + $0x10] sm:$0xff]
    %v109 = vld [vmem:[%s5 + $0x18] sm:$0xff]
    %v110 = vld [vmem:[%s6] sm:$0x1]
    %v112 = vperm.slane %v110, 0
    %v115 = vsel %vm81, %v105, 0
    %117 = vmatpush.msra.mxu0 0.0
    %118 = vmatpush.msra.mxu0 0.0
    %119 = vmatpush.msra.mxu0 0.0
    %120 = vmatpush.msra.mxu0 0.0
    %121 = vmatpush.msra.mxu0 0.0
    %122 = vmatpush.msra.mxu0 0.0
    %123 = vmatpush.msra.mxu0 0.0
    %124 = vmatpush.msra.mxu0 0.0
    %125 = vmatpush.msra.mxu0 0.0
    %126 = vmatpush.msra.mxu0 0.0
    %127 = vmatpush.msra.mxu0 0.0
    %128 = vmatpush.msra.mxu0 0.0
    %129 = vmatpush.msra.mxu0 %v109
    %130 = vmatpush.msra.mxu0 %v108
    %131 = vmatpush.msra.mxu0 %v107
    %132 = vmatpush.msra.mxu0 %v106
    %133 = vmatmul.f32.gmra.mxu0 %v115
    %v134 = vpop.f32.mrf.mxu0
    %v135 = vadd.f32 %v112, %v134
    %136 = vdwg.mxu0
    %v137 = vlaneseq
    %v138 = vand.u32 %v137, 127
    %v139 = vtanh.pop %v135
    %v140 = vmax.f32 %v135, -20.0
    %v141 = vmin.f32 %v140, 2.0
    %v142 = vmul.f32 %v141, 1.442695
    %v143 = vpow.pop %v142
    %vm144 = vcmp.ge.s32.totalorder %v138, 8
    %v145 = vsel %vm144, %v143, %v139
    %146 = vst.msk [vmem:[#allocation5] sm:$0xff] %vm48, %v145
    // Predicated region
    $region34: #{tpu_custom_call.1} parent=1 // pred_check
      _
    $region35: #{tpu_custom_call.1} parent=1 // pred_check_branch
      %148 = sbr.rel (0) target = $region37
    $region36: #{tpu_custom_call.1} parent=1 // pred_region
      %150 = vsyncadd [#allocation4], 0
      %s152 = sshll.u32 [#allocation5], 4
      %s153 = int_to_ptr.vmem [resolvable:$true] %s152
      %s154 = sshll.u32 %s7, 4
      %s155 = int_to_ptr.hbm [resolvable:$true] %s154
      %157 = dma.vmem_to_hbm [thread:$0]  %s153, 128, %s155, [#allocation4]
    $region37: #{tpu_custom_call.1} parent=1 // pred_fallthru
      _
    // Predicated region
    $region38: #{tpu_custom_call.1} parent=1 // pred_check
      _
    $region39: #{tpu_custom_call.1} parent=1 // pred_check_branch
      %159 = sbr.rel (0) target = $region41
    $region40: #{tpu_custom_call.1} parent=1 // pred_region
      %161 = dma.done [#allocation4], 128
    $region41: #{tpu_custom_call.1} parent=1 // pred_fallthru
      _
    %162 = vsyncpa [#allocation3], 1
    %163 = vsyncpa [#allocation4], 1

</llo_original>
